<compile_context>
chip_gen: v6e
topology: v6e:2x2x1
jax: 0.10.0
libtpu: 0.0.40
codegen_flags: <defaults>
</compile_context>

<pallas_src>
import math

import jax
import jax.numpy as jnp
import numpy as np
from jax.experimental import pallas as pl
from jax.experimental.pallas import tpu as pltpu

_MASK_VALUE = -1e30  # large finite negative (avoids -inf - -inf = NaN risk)


def _pick_tile(dim, max_tile, unit):
    """Largest multiple of `unit` that divides `dim` and is <= max_tile, else `dim`
    (a full-extent block is always a legal block shape)."""
    if dim <= max_tile:
        return dim
    t = (max_tile // unit) * unit
    while t >= unit:
        if dim % t == 0:
            return t
        t -= unit
    return dim


# ---------------------------------------------------------------------------
# Tiled linear (y = x @ W + b), bf16 MXU operands, f32 accumulation.
# x row tile stays resident across the column grid axis; weights are bf16 at
# rest so the re-streamed slab is half the bytes.
# ---------------------------------------------------------------------------
def _linear_kernel(x_ref, w_ref, b_ref, o_ref):
    x = x_ref[...].astype(jnp.bfloat16)
    w = w_ref[...].astype(jnp.bfloat16)
    acc = jnp.dot(x, w, preferred_element_type=jnp.float32)
    o_ref[...] = (acc + b_ref[...].astype(jnp.float32)).astype(o_ref.dtype)


def _linear(x2d, w, b, *, out_dtype=None, row_block=256, col_block=256):
    M, K = x2d.shape
    _, N = w.shape
    out_dtype = x2d.dtype if out_dtype is None else out_dtype
    tm = _pick_tile(M, row_block, 8)     # sublane axis: multiple of 8 (or full)
    tn = _pick_tile(N, col_block, 128)   # lane axis: multiple of 128 (or full)
    grid = (M // tm, N // tn)
    return pl.pallas_call(
        _linear_kernel,
        out_shape=jax.ShapeDtypeStruct((M, N), out_dtype),
        grid_spec=pltpu.PrefetchScalarGridSpec(
            num_scalar_prefetch=0,
            grid=grid,
            in_specs=[
                pl.BlockSpec((tm, K), lambda i, j: (i, 0)),   # x row tile (resident over j)
                pl.BlockSpec((K, tn), lambda i, j: (0, j)),   # bf16 weight col slab
                pl.BlockSpec((1, tn), lambda i, j: (0, j)),   # bias slab
            ],
            out_specs=pl.BlockSpec((tm, tn), lambda i, j: (i, j)),
        ),
        compiler_params=pltpu.CompilerParams(
            dimension_semantics=("parallel", "parallel")),
    )(x2d, w, b)


# ---------------------------------------------------------------------------
# Flash-attention forward kernel (causal, online softmax).
# Blocks: q (1, tq, hd), k/v (1, tk, hd), out (1, tq, hd); f32 VMEM scratch.
# Softmax scale is already folded into q (via the QKV projection weights).
# ---------------------------------------------------------------------------
def _flash_attn_kernel(q_ref, k_ref, v_ref, o_ref, m_sc, l_sc, acc_sc):
    tq = q_ref.shape[1]
    tk = k_ref.shape[1]
    qi = pl.program_id(1)
    ki = pl.program_id(2)
    nk = pl.num_programs(2)
    q_start = qi * tq
    q_end = q_start + tq - 1
    k_start = ki * tk

    @pl.when(ki == 0)
    def _init():
        m_sc[...] = jnp.full_like(m_sc, _MASK_VALUE)
        l_sc[...] = jnp.zeros_like(l_sc)
        acc_sc[...] = jnp.zeros_like(acc_sc)

    def _update(s):
        m_prev = m_sc[...]                                           # (tq, 1)
        m_new = jnp.maximum(m_prev, jnp.max(s, axis=-1, keepdims=True))
        alpha = jnp.exp(m_prev - m_new)
        p = jnp.exp(s - m_new)                                       # f32
        l_sc[...] = alpha * l_sc[...] + jnp.sum(p, axis=-1, keepdims=True)
        pv = jax.lax.dot_general(p.astype(jnp.bfloat16), v_ref[0],
                                 (((1,), (0,)), ((), ())),
                                 preferred_element_type=jnp.float32)  # (tq, hd)
        acc_sc[...] = alpha * acc_sc[...] + pv
        m_sc[...] = m_new

    # Skip kv blocks entirely above the causal diagonal (their DMA is also
    # elided by the clamped index_map in the wrapper).
    @pl.when(k_start <= q_end)
    def _compute():
        q = q_ref[0]                       # bf16, scale pre-folded into weights
        k = k_ref[0]                       # bf16
        # q @ k^T without materializing a transpose: contract last dims.
        s = jax.lax.dot_general(q, k, (((1,), (1,)), ((), ())),
                                preferred_element_type=jnp.float32)   # (tq, tk)

        interior = (k_start + tk - 1) <= q_start   # fully below the diagonal

        @pl.when(interior)
        def _no_mask():
            _update(s)

        @pl.when(jnp.logical_not(interior))
        def _diagonal():
            row = q_start + jax.lax.broadcasted_iota(jnp.int32, (tq, tk), 0)
            col = k_start + jax.lax.broadcasted_iota(jnp.int32, (tq, tk), 1)
            _update(jnp.where(row >= col, s, _MASK_VALUE))

    @pl.when(ki == nk - 1)
    def _finalize():
        inv_l = pl.reciprocal(l_sc[...], approx=True)
        o_ref[0] = (acc_sc[...] * inv_l).astype(o_ref.dtype)


def _flash_scratch(tq, hd):
    return [
        pltpu.VMEM((tq, 1), jnp.float32),    # running max m
        pltpu.VMEM((tq, 1), jnp.float32),    # running sum l
        pltpu.VMEM((tq, hd), jnp.float32),   # output accumulator
    ]


def _flash_attention_split(q, k, v, *, q_block=256, kv_block=256):
    """q, k, v in (B*H, T, hd) layout (head split done by XLA)."""
    BH, T, hd = q.shape
    tq = _pick_tile(T, q_block, 8)
    tk = _pick_tile(T, kv_block, 8)
    nq, nk = T // tq, T // tk

    def kv_map(b, i, j):
        # Clamp to the last causally-needed kv block -> repeated block index
        # on the masked tail, so Pallas elides those K/V DMAs.
        return (b, jnp.minimum(j, (i * tq + tq - 1) // tk), 0)

    return pl.pallas_call(
        _flash_attn_kernel,
        out_shape=jax.ShapeDtypeStruct((BH, T, hd), q.dtype),
        grid_spec=pltpu.PrefetchScalarGridSpec(
            num_scalar_prefetch=0,
            grid=(BH, nq, nk),
            in_specs=[
                pl.BlockSpec((1, tq, hd), lambda b, i, j: (b, i, 0)),  # q
                pl.BlockSpec((1, tk, hd), kv_map),                     # k
                pl.BlockSpec((1, tk, hd), kv_map),                     # v
            ],
            out_specs=pl.BlockSpec((1, tq, hd), lambda b, i, j: (b, i, 0)),
            scratch_shapes=_flash_scratch(tq, hd),
        ),
        compiler_params=pltpu.CompilerParams(
            dimension_semantics=("parallel", "parallel", "arbitrary")),
    )(q, k, v)


def _flash_attention_fused(qkv, *, n_head, q_block=256, kv_block=256):
    """qkv in fused (B, T, 3C) layout; requires head_dim % 128 == 0.

    Per-head Q/K/V column blocks are read straight out of the fused buffer and
    the attention output is written directly in (B, T, C) layout (lane-dense),
    eliminating the XLA head split/merge transposes entirely.
    """
    B, T, C3 = qkv.shape
    C = C3 // 3
    hd = C // n_head
    assert hd % 128 == 0
    tq = _pick_tile(T, q_block, 8)
    tk = _pick_tile(T, kv_block, 8)
    nq, nk = T // tq, T // tk

    def q_map(bh, i, j):
        return (bh // n_head, i, bh % n_head)

    def k_map(bh, i, j):
        return (bh // n_head, jnp.minimum(j, (i * tq + tq - 1) // tk),
                n_head + bh % n_head)

    def v_map(bh, i, j):
        return (bh // n_head, jnp.minimum(j, (i * tq + tq - 1) // tk),
                2 * n_head + bh % n_head)

    def o_map(bh, i, j):
        return (bh // n_head, i, bh % n_head)

    return pl.pallas_call(
        _flash_attn_kernel,
        out_shape=jax.ShapeDtypeStruct((B, T, C), qkv.dtype),
        grid_spec=pltpu.PrefetchScalarGridSpec(
            num_scalar_prefetch=0,
            grid=(B * n_head, nq, nk),
            in_specs=[
                pl.BlockSpec((1, tq, hd), q_map),   # q cols of head h
                pl.BlockSpec((1, tk, hd), k_map),   # k cols of head h (clamped j)
                pl.BlockSpec((1, tk, hd), v_map),   # v cols of head h (clamped j)
            ],
            out_specs=pl.BlockSpec((1, tq, hd), o_map),  # (B, T, C) layout
            scratch_shapes=_flash_scratch(tq, hd),
        ),
        compiler_params=pltpu.CompilerParams(
            dimension_semantics=("parallel", "parallel", "arbitrary")),
    )(qkv, qkv, qkv)


# ---------------------------------------------------------------------------
# Full forward pass: x (B, T, C) -> y (B, T, C)
# Weights stored pre-transposed as (in, out): y = x @ W + b.
# ---------------------------------------------------------------------------
def causal_self_attention(x, w_attn, b_attn, w_proj, b_proj, *, n_head,
                          q_block=256, kv_block=256):
    B, T, C = x.shape
    hd = C // n_head
    dtype = x.dtype
    scale = 1.0 / math.sqrt(hd)

    # Fold the softmax scale into the Q columns of the QKV projection (one-time
    # constant fold) and keep all weights/biases bf16 at rest.
    w_attn_f = jnp.concatenate([w_attn[:, :C] * scale, w_attn[:, C:]], axis=1)
    b_attn_f = jnp.concatenate([b_attn[:, :C] * scale, b_attn[:, C:]], axis=1)
    w_attn_bf = w_attn_f.astype(jnp.bfloat16)
    b_attn_bf = b_attn_f.astype(jnp.bfloat16)
    w_proj_bf = w_proj.astype(jnp.bfloat16)
    b_proj_bf = b_proj.astype(jnp.bfloat16)

    # 1) QKV projection -> bf16 activations (halves HBM traffic downstream).
    qkv = _linear(x.reshape(B * T, C), w_attn_bf, b_attn_bf,
                  out_dtype=jnp.bfloat16)                        # (B*T, 3C) bf16

    # 2+3) Causal flash attention.
    if hd % 128 == 0:
        # Lane-dense path: per-head blocks straight from the fused qkv buffer,
        # output written directly in (B, T, C) layout (no XLA transposes).
        y2d = _flash_attention_fused(qkv.reshape(B, T, 3 * C), n_head=n_head,
                                     q_block=q_block, kv_block=kv_block
                                     ).reshape(B * T, C)
    else:
        # TODO(synk): for head_dim < 128 a per-head column block of the fused
        # qkv buffer is not a legal (8,128)-aligned BlockSpec, so head
        # split/merge stays as XLA transposes (on bf16 data = half the bytes).
        qkv5 = qkv.reshape(B, T, 3, n_head, hd)
        q = qkv5[:, :, 0].transpose(0, 2, 1, 3).reshape(B * n_head, T, hd)
        k = qkv5[:, :, 1].transpose(0, 2, 1, 3).reshape(B * n_head, T, hd)
        v = qkv5[:, :, 2].transpose(0, 2, 1, 3).reshape(B * n_head, T, hd)
        y = _flash_attention_split(q, k, v, q_block=q_block, kv_block=kv_block)
        y2d = y.reshape(B, n_head, T, hd).transpose(0, 2, 1, 3).reshape(B * T, C)

    # 4) Output projection (tiled matmul kernel), back to the input dtype.
    out = _linear(y2d, w_proj_bf, b_proj_bf, out_dtype=dtype)    # (B*T, C)
    return out.reshape(B, T, C)
    # TODO(synk): attn_dropout / resid_dropout omitted (dropout=0.0, eval mode).


# ---------------------------------------------------------------------------
# Pure-JAX reference mirroring the PyTorch forward (dropout=0), for validation.
# ---------------------------------------------------------------------------
def _reference(x, w_attn, b_attn, w_proj, b_proj, n_head):
    B, T, C = x.shape
    hd = C // n_head
    qkv = jnp.einsum('btc,cd->btd', x, w_attn) + b_attn[0]
    q, k, v = jnp.split(qkv, 3, axis=-1)

    def heads(t):
        return t.reshape(B, T, n_head, hd).transpose(0, 2, 1, 3)

    q, k, v = heads(q), heads(k), heads(v)
    att = jnp.einsum('bhtd,bhsd->bhts', q, k) / math.sqrt(hd)
    mask = jnp.tril(jnp.ones((T, T), bool))
    att = jnp.where(mask, att, -jnp.inf)
    att = jax.nn.softmax(att, axis=-1)
    y = jnp.einsum('bhts,bhsd->bhtd', att, v)
    y = y.transpose(0, 2, 1, 3).reshape(B, T, C)
    return jnp.einsum('btc,cd->btd', y, w_proj) + b_proj[0]


def _make_params(key, C):
    k1, k2, k3, k4 = jax.random.split(key, 4)
    w_attn = 0.02 * jax.random.normal(k1, (C, 3 * C), dtype=jnp.float32)
    b_attn = 0.02 * jax.random.normal(k2, (1, 3 * C), dtype=jnp.float32)
    w_proj = 0.02 * jax.random.normal(k3, (C, C), dtype=jnp.float32)
    b_proj = 0.02 * jax.random.normal(k4, (1, C), dtype=jnp.float32)
    return w_attn, b_attn, w_proj, b_proj


if __name__ == "__main__":
    key = jax.random.PRNGKey(0)

    # Config 1: small GPT-ish shapes (head_dim=8) -> exercises the split path.
    # Config 2: head_dim=128 -> exercises the fused lane-dense (no-transpose) path.
    configs = [
        dict(B=2, T=8, C=32, NH=4),
        dict(B=1, T=8, C=256, NH=2),
    ]

    for cfg in configs:
        B, T, C, NH = cfg["B"], cfg["T"], cfg["C"], cfg["NH"]
        key, kx, kp = jax.random.split(key, 3)
        x = jax.random.normal(kx, (B, T, C), dtype=jnp.float32)
        w_attn, b_attn, w_proj, b_proj = _make_params(kp, C)

        out = causal_self_attention(x, w_attn, b_attn, w_proj, b_proj, n_head=NH)
        out = jax.block_until_ready(out)

        # bf16 MXU operands / bf16 activations with f32 accumulation -> relaxed tol.
        ref = _reference(x, w_attn, b_attn, w_proj, b_proj, NH)
        np.testing.assert_allclose(np.asarray(out), np.asarray(ref),
                                   atol=1e-2, rtol=5e-2)

    print("KERNEL_OK")
</pallas_src>

<mosaic_0001>
module attributes {stable_mosaic.version = 11 : i64} {
  func.func @_linear_kernel(%arg0: i32, %arg1: i32, %arg2: memref<16x32xf32, #tpu.memory_space<vmem>>, %arg3: memref<32x96xbf16, #tpu.memory_space<vmem>>, %arg4: memref<1x96xbf16, #tpu.memory_space<vmem>>, %arg5: memref<16x96xbf16, #tpu.memory_space<vmem>>) attributes {dimension_semantics = [#tpu.dimension_semantics<parallel>, #tpu.dimension_semantics<parallel>], iteration_bounds = array<i64: 1, 1>, scalar_prefetch = 0 : i64, scratch_operands = 0 : i64, tpu.core_type = #tpu.core_type<tc>, window_params = [{transform_indices = @transform_0, window_bounds = array<i64: 16, 32>}, {transform_indices = @transform_1, window_bounds = array<i64: 32, 96>}, {transform_indices = @transform_2, window_bounds = array<i64: 1, 96>}, {transform_indices = @transform_3, window_bounds = array<i64: 16, 96>}]} {
    %c0 = arith.constant 0 : index
    %c0_0 = arith.constant 0 : index
    %0 = vector.load %arg2[%c0, %c0_0] : memref<16x32xf32, #tpu.memory_space<vmem>>, vector<16x32xf32>
    %1 = arith.truncf %0 : vector<16x32xf32> to vector<16x32xbf16>
    %c0_1 = arith.constant 0 : index
    %c0_2 = arith.constant 0 : index
    %2 = vector.load %arg3[%c0_1, %c0_2] : memref<32x96xbf16, #tpu.memory_space<vmem>>, vector<32x96xbf16>
    %cst = arith.constant dense<0.000000e+00> : vector<16x96xf32>
    %3 = tpu.matmul %1, %2, %cst {dimension_numbers = #tpu.dot_dimension_numbers<[1], [0], [0], [1], [0, 0, 1, 1], [], []>} : vector<16x32xbf16>, vector<32x96xbf16>, vector<16x96xf32> -> vector<16x96xf32>
    %c0_3 = arith.constant 0 : index
    %c0_4 = arith.constant 0 : index
    %4 = vector.load %arg4[%c0_3, %c0_4] : memref<1x96xbf16, #tpu.memory_space<vmem>>, vector<1x96xbf16>
    %5 = arith.extf %4 : vector<1x96xbf16> to vector<1x96xf32>
    %6 = vector.broadcast %5 : vector<1x96xf32> to vector<16x96xf32>
    %7 = arith.addf %3, %6 : vector<16x96xf32>
    %8 = arith.truncf %7 : vector<16x96xf32> to vector<16x96xbf16>
    %c0_5 = arith.constant 0 : index
    %c0_6 = arith.constant 0 : index
    %9 = vector.load %arg5[%c0_5, %c0_6] : memref<16x96xbf16, #tpu.memory_space<vmem>>, vector<16x96xbf16>
    tpu.vector_store %arg5[%c0_5, %c0_6], %8 {strides = array<i32>} : memref<16x96xbf16, #tpu.memory_space<vmem>>, vector<16x96xbf16>,
    return
  }
  func.func @transform_0(%arg0: i32, %arg1: i32) -> (i32, i32) {
    %c0_i32 = arith.constant 0 : i32
    %c0_i32_0 = arith.constant 0 : i32
    return %arg0, %c0_i32 : i32, i32
  }
  func.func @transform_1(%arg0: i32, %arg1: i32) -> (i32, i32) {
    %c0_i32 = arith.constant 0 : i32
    %c0_i32_0 = arith.constant 0 : i32
    return %c0_i32, %arg1 : i32, i32
  }
  func.func @transform_2(%arg0: i32, %arg1: i32) -> (i32, i32) {
    %c0_i32 = arith.constant 0 : i32
    %c0_i32_0 = arith.constant 0 : i32
    return %c0_i32, %arg1 : i32, i32
  }
  func.func @transform_3(%arg0: i32, %arg1: i32) -> (i32, i32) {
    %c0_i32 = arith.constant 0 : i32
    return %arg0, %arg1 : i32, i32
  }
}

</mosaic_0001>

<llo_original>
// kernel: tpu_custom_call.1
$region0: #{tpu_custom_call.1}
  #allocation0 [shape = 'u32[]', space=smem, size = 0x4, offset = 0x4, fixed_abs, tag = 'smem constant byte address 0x4 - core index']
  #allocation1 [shape = 'u32[144,128]{1,0:T(1,128)}', space=vmem, size = 0x12000, scoped, tag = 'internal scratch']
  %s0 = inlined_call_operand.hbm [shape: f32[16,32], index: 0, kind: input, shape index: {}]
  %s1 = inlined_call_operand.hbm [shape: bf16[32,96], index: 1, kind: input, shape index: {}]
  %s2 = inlined_call_operand.vmem [shape: bf16[1,96], index: 2, kind: input, shape index: {}]
  %s3 = inlined_call_operand.hbm [shape: bf16[16,96], index: 3, kind: output, shape index: {}]
  %s4 = sld [smem:[#allocation0]]
  $region30: #{tpu_custom_call.1} parent=0
    _
  %s6 = ssub.s32 1, %s4
  %s7 = scalar_select 0, %s6, %s4
  $region1: #{tpu_custom_call.1} parent=0
    #allocation2 [shape = 'u8[8192]{0}', space=vmem, size = 0x2000, scoped, tag = 'input window, operand 0, single buffered']
    #allocation3 [shape = 's32[1]{0}', space=sflag, size = 0x4, scoped, tag = 'scoped memory for tpu_custom_call.1']
    #allocation4 [shape = 's32[1]{0}', space=sflag, size = 0x4, scoped, tag = 'scoped memory for tpu_custom_call.1']
    #allocation5 [shape = 'u8[8192]{0}', space=vmem, size = 0x2000, scoped, tag = 'input window, operand 1, single buffered']
    #allocation6 [shape = 's32[1]{0}', space=sflag, size = 0x4, scoped, tag = 'scoped memory for tpu_custom_call.1']
    #allocation7 [shape = 'u8[4096]{0}', space=vmem, size = 0x1000, scoped, tag = 'output window, operand 0, single buffered']
    %8 = vsyncpa [#allocation3], 0
    %9 = vsyncpa [#allocation6], 0
    %10 = vsyncpa [#allocation4], 0
    // Predicated region
    $region2: #{tpu_custom_call.1} parent=1 // pred_check
      _
    $region3: #{tpu_custom_call.1} parent=1 // pred_check_branch
      %12 = sbr.rel (0) target = $region5
    $region4: #{tpu_custom_call.1} parent=1 // pred_region
      %s14 = ssub.s32 256, 256
      %15 = vsyncadd [#allocation3], %s14
      %s16 = sshll.u32 [#allocation2], 4
      %s17 = int_to_ptr.vmem [resolvable:$true] %s16
      %22 = dma.hbm_to_vmem [thread:$0]  %s0, 256, %s17, [#allocation3], 128, 128, 8
    $region5: #{tpu_custom_call.1} parent=1 // pred_fallthru
      _
    // Predicated region
    $region6: #{tpu_custom_call.1} parent=1 // pred_check
      _
    $region7: #{tpu_custom_call.1} parent=1 // pred_check_branch
      %24 = sbr.rel (0) target = $region9
    $region8: #{tpu_custom_call.1} parent=1 // pred_region
      %s26 = ssub.s32 256, 256
      %27 = vsyncadd [#allocation6], %s26
      %s28 = sshll.u32 [#allocation5], 4
      %s29 = int_to_ptr.vmem [resolvable:$true] %s28
      %34 = dma.hbm_to_vmem [thread:$0]  %s1, 256, %s29, [#allocation6], 64, 64, 4
    $region9: #{tpu_custom_call.1} parent=1 // pred_fallthru
      _
    // Predicated region
    $region10: #{tpu_custom_call.1} parent=1 // pred_check
      _
    $region11: #{tpu_custom_call.1} parent=1 // pred_check_branch
      %36 = sbr.rel (0) target = $region13
    $region12: #{tpu_custom_call.1} parent=1 // pred_region
      _
    $region13: #{tpu_custom_call.1} parent=1 // pred_fallthru
      _
    // Predicated region
    $region14: #{tpu_custom_call.1} parent=1 // pred_check
      _
    $region15: #{tpu_custom_call.1} parent=1 // pred_check_branch
      %38 = sbr.rel (0) target = $region17
    $region16: #{tpu_custom_call.1} parent=1 // pred_region
      %39 = dma.done [#allocation3], 256
    $region17: #{tpu_custom_call.1} parent=1 // pred_fallthru
      _
    // Predicated region
    $region18: #{tpu_custom_call.1} parent=1 // pred_check
      _
    $region19: #{tpu_custom_call.1} parent=1 // pred_check_branch
      %41 = sbr.rel (0) target = $region21
    $region20: #{tpu_custom_call.1} parent=1 // pred_region
      %42 = dma.done [#allocation6], 256
    $region21: #{tpu_custom_call.1} parent=1 // pred_fallthru
      _
    %v44 = vld [vmem:[#allocation2] sm:$0xff]
    %v45 = vld [vmem:[#allocation2 + $0x8] sm:$0xff]
    %v46 = vpack.c.bf16 %v45, %v44
    %v47 = vld [vmem:[#allocation5] sm:$0xf]
    %v48 = vld [vmem:[#allocation5 + $0x4] sm:$0xf]
    %v49 = vld [vmem:[#allocation5 + $0x8] sm:$0xf]
    %v50 = vld [vmem:[#allocation5 + $0xc] sm:$0xf]
    %v51 = vld [vmem:[%s2] sm:$0x1]
    %v52 = vunpack.c.l.bf16 %v51
    %v53 = vlaneseq
    %v54 = vshrl.u32 %v53, 7
    %v55 = vsub.s32 0, %v54
    %v56 = vrot.slane %v52, %v55
    %v61 = vunpack.c.l.b16 %v47
    %v62 = vunpack.c.l.b16 %v48
    %v63 = vunpack.c.l.b16 %v49
    %v64 = vunpack.c.l.b16 %v50
    %v65 = vpack.c.b16 %v62, %v61
    %v66 = vpack.c.b16 %v64, %v63
    %vm69 = vcmask 261120
    %v71 = vsel %vm69, %v46, 0
    %73 = vmatprep.subr.bf16.mxu0 0
    %74 = vmatpush1.bf16.msra.mxu0 0
    %75 = vmatprep.subr.bf16.mxu0 0
    %76 = vmatpush1.bf16.msra.mxu0 0
    %77 = vmatprep.subr.bf16.mxu0 0
    %78 = vmatpush1.bf16.msra.mxu0 0
    %79 = vmatprep.subr.bf16.mxu0 0
    %80 = vmatpush1.bf16.msra.mxu0 0
    %81 = vmatprep.subr.bf16.mxu0 0
    %82 = vmatpush1.bf16.msra.mxu0 0
    %83 = vmatprep.subr.bf16.mxu0 0
    %84 = vmatpush1.bf16.msra.mxu0 0
    %85 = vmatprep.subr.bf16.mxu0 0
    %86 = vmatpush1.bf16.msra.mxu0 %v66
    %87 = vmatprep.subr.bf16.mxu0 0
    %88 = vmatpush1.bf16.msra.mxu0 %v65
    %89 = vmatprep.subr.bf16.mxu0 0
    %90 = vmatpush2.bf16.msra.mxu0 0
    %91 = vmatprep.subr.bf16.mxu0 0
    %92 = vmatpush2.bf16.msra.mxu0 0
    %93 = vmatprep.subr.bf16.mxu0 0
    %94 = vmatpush2.bf16.msra.mxu0 0
    %95 = vmatprep.subr.bf16.mxu0 0
    %96 = vmatpush2.bf16.msra.mxu0 0
    %97 = vmatprep.subr.bf16.mxu0 0
    %98 = vmatpush2.bf16.msra.mxu0 0
    %99 = vmatprep.subr.bf16.mxu0 0
    %100 = vmatpush2.bf16.msra.mxu0 0
    %101 = vmatprep.subr.bf16.mxu0 0
    %102 = vmatpush2.bf16.msra.mxu0 0
    %103 = vmatprep.subr.bf16.mxu0 0
    %104 = vmatpush2.bf16.msra.mxu0 0
    %105 = vmatprep.mubr.bf16.mxu0 0
    %106 = vmatmul.mubr.bf16.gmra.mxu0 %v71
    %v107 = vpop.f32.mrf.mxu0
    %v108 = vadd.f32 %v56, %v107
    %v109 = vpop.f32.mrf.mxu0
    %v110 = vpop.f32.mrf.mxu0
    %v111 = vadd.f32 %v56, %v110
    %v112 = vpop.f32.mrf.mxu0
    %113 = vdwg.mxu0
    %v114 = vpack.c.bf16 %v111, %v108
    %v116 = vunpack.c.l.b16 %v114
    %v117 = vunpack.c.h.b16 %v114
    %v118 = vpack.c.b16 %v116, %v116
    %v119 = vpack.c.b16 %v117, %v117
    %vm122 = vcmask 781312
    %123 = vst.msk [vmem:[#allocation7] sm:$0xf] %vm122, %v118
    %124 = vst.msk [vmem:[#allocation7 + $0x4] sm:$0xf] %vm122, %v119
    // Predicated region
    $region22: #{tpu_custom_call.1} parent=1 // pred_check
      _
    $region23: #{tpu_custom_call.1} parent=1 // pred_check_branch
      %126 = sbr.rel (0) target = $region25
    $region24: #{tpu_custom_call.1} parent=1 // pred_region
      %s128 = ssub.s32 128, 128
      %129 = vsyncadd [#allocation4], %s128
      %s130 = sshll.u32 [#allocation7], 4
      %s131 = int_to_ptr.vmem [resolvable:$true] %s130
      %136 = dma.vmem_to_hbm [thread:$0]  %s131, 128, %s3, [#allocation4], 64, 64, 4
    $region25: #{tpu_custom_call.1} parent=1 // pred_fallthru
      _
    // Predicated region
    $region26: #{tpu_custom_call.1} parent=1 // pred_check
      _
    $region27: #{tpu_custom_call.1} parent=1 // pred_check_branch
      %138 = sbr.rel (0) target = $region29
    $region28: #{tpu_custom_call.1} parent=1 // pred_region
      %139 = dma.done [#allocation4], 128
    $region29: #{tpu_custom_call.1} parent=1 // pred_fallthru
      _
    %140 = vsyncpa [#allocation3], 1
    %141 = vsyncpa [#allocation6], 1
    %142 = vsyncpa [#allocation4], 1

</llo_original>
